<compile_context>
chip_gen: v5e
topology: v5e:2x2
jax: 0.10.0
libtpu: 0.0.40
codegen_flags: <defaults>
</compile_context>

<pallas_src>
import functools

import jax
import jax.numpy as jnp
from jax.experimental import pallas as pl
from jax.experimental.pallas import tpu as pltpu

HIDDEN_SIZE = 30
NUM_CLASSES = 2
VOCAB_SIZE = 40          # stand-in for `current_idx` in the reference script
BATCH = 2
SEQ_LEN = 8

LANE = 128
SUBLANE = 8


def _round_up(x, m):
    return ((x + m - 1) // m) * m


def rnn_seq_kernel(x_ref, h0_ref, wi_ref, wh_ref, bh_ref, wo_ref, bo_ref,
                   logits_ref, hout_ref):
    """One timestep per grid iteration.

    x_ref      : [Bp, Vp]   current timestep input (squeezed time dim)
    h0_ref     : [Bp, Hp]   initial hidden (read only at t == 0)
    wi/wh/wo   : padded weights, VMEM-resident for all steps
    bh/bo      : biases pre-broadcast to [Bp, .] on the host
    logits_ref : [Bp, Cp]   per-step logits (lane-dense store)
    hout_ref   : [Bp, Hp]   carried hidden state; also the final-hidden output
    """
    t = pl.program_id(0)

    @pl.when(t == 0)
    def _():
        hout_ref[...] = h0_ref[...]

    h = hout_ref[...]                                            # [Bp, Hp]
    x_proj = jnp.dot(x_ref[...], wi_ref[...],
                     preferred_element_type=jnp.float32)         # [Bp, Hp]
    h_proj = jnp.dot(h, wh_ref[...],
                     preferred_element_type=jnp.float32)         # [Bp, Hp]
    h_new = jnp.tanh(x_proj + h_proj + bh_ref[...])              # [Bp, Hp]

    hout_ref[...] = h_new
    logits_ref[...] = (jnp.dot(h_new, wo_ref[...],
                               preferred_element_type=jnp.float32)
                       + bo_ref[...]).astype(logits_ref.dtype)


def _simple_rnn_sequence_impl(x_seq, h0, params):
    """Fused multi-step RNN.  x_seq: [T, B, V], h0: [B, H].

    Returns (logits_seq [T, B, C], h_final [B, H])."""
    wi, wh, bh, wo, bo = params
    T, B, V = x_seq.shape
    H = wh.shape[0]
    C = wo.shape[1]

    Bp = max(_round_up(B, SUBLANE), SUBLANE)
    Vp = _round_up(V, LANE)
    Hp = _round_up(H, LANE)
    Cp = _round_up(C, LANE)

    # Zero-pad everything once (math unchanged: padded rows/cols are zero, so
    # padded hidden columns stay exactly tanh(0)+0 contributions = 0).
    f32 = jnp.float32
    x_p = jnp.pad(x_seq.astype(f32), ((0, 0), (0, Bp - B), (0, Vp - V)))
    h0_p = jnp.pad(h0.astype(f32), ((0, Bp - B), (0, Hp - H)))
    wi_p = jnp.pad(wi.astype(f32), ((0, Vp - V), (0, Hp - H)))
    wh_p = jnp.pad(wh.astype(f32), ((0, Hp - H), (0, Hp - H)))
    bh_p = jnp.broadcast_to(jnp.pad(bh.astype(f32), ((0, 0), (0, Hp - H))),
                            (Bp, Hp))
    wo_p = jnp.pad(wo.astype(f32), ((0, Hp - H), (0, Cp - C)))
    bo_p = jnp.broadcast_to(jnp.pad(bo.astype(f32), ((0, 0), (0, Cp - C))),
                            (Bp, Cp))

    # Advisory scheduler hint.
    flops = int(T * (2 * Bp * Vp * Hp + 2 * Bp * Hp * Hp + 2 * Bp * Hp * Cp))
    transcendentals = int(T * Bp * Hp)
    bytes_accessed = int(4 * (T * Bp * Vp + Bp * Hp + Vp * Hp + Hp * Hp
                              + Bp * Hp + Hp * Cp + Bp * Cp
                              + T * Bp * Cp + Bp * Hp))

    logits_p, h_p = pl.pallas_call(
        rnn_seq_kernel,
        out_shape=(
            jax.ShapeDtypeStruct((T, Bp, Cp), jnp.float32),
            jax.ShapeDtypeStruct((Bp, Hp), jnp.float32),
        ),
        grid_spec=pltpu.PrefetchScalarGridSpec(
            num_scalar_prefetch=0,
            grid=(T,),
            in_specs=[
                # per-step input slice (time dim squeezed out)
                pl.BlockSpec((None, Bp, Vp), lambda t: (t, 0, 0)),
                # initial hidden + weights/biases: same block every step ->
                # loaded once, VMEM-resident for the whole sequence.
                pl.BlockSpec((Bp, Hp), lambda t: (0, 0)),
                pl.BlockSpec((Vp, Hp), lambda t: (0, 0)),
                pl.BlockSpec((Hp, Hp), lambda t: (0, 0)),
                pl.BlockSpec((Bp, Hp), lambda t: (0, 0)),
                pl.BlockSpec((Hp, Cp), lambda t: (0, 0)),
                pl.BlockSpec((Bp, Cp), lambda t: (0, 0)),
            ],
            out_specs=(
                pl.BlockSpec((None, Bp, Cp), lambda t: (t, 0, 0)),
                # constant block index -> acts as the VMEM-resident carry.
                pl.BlockSpec((Bp, Hp), lambda t: (0, 0)),
            ),
        ),
        compiler_params=pltpu.CompilerParams(
            dimension_semantics=("arbitrary",)),
        cost_estimate=pl.CostEstimate(flops=flops,
                                      transcendentals=transcendentals,
                                      bytes_accessed=bytes_accessed),
        # Alias the (padded) incoming hidden buffer with the final-hidden
        # output: no fresh HBM allocation / extra round-trip for the state.
        input_output_aliases={1: 1},
    )(x_p, h0_p, wi_p, wh_p, bh_p, wo_p, bo_p)

    return logits_p[:, :B, :C], h_p[:B, :H]


simple_rnn_sequence = jax.jit(_simple_rnn_sequence_impl)


def simple_rnn_step(x, hidden, params):
    """Exact PyTorch forward signature: one step. x: [B, V], hidden: [B, H]."""
    logits_seq, h_new = simple_rnn_sequence(x[None], hidden, params)
    return logits_seq[0], h_new


def init_params(key, vocab_size, hidden_size, num_classes):
    """nn.Linear-style init; weights stored pre-transposed as [in, out],
    biases as [1, out]."""
    k1, k2, k3, k4, k5 = jax.random.split(key, 5)
    s_i = 1.0 / jnp.sqrt(vocab_size)
    s_h = 1.0 / jnp.sqrt(hidden_size)
    wi = jax.random.uniform(k1, (vocab_size, hidden_size), jnp.float32, -s_i, s_i)
    wh = jax.random.uniform(k2, (hidden_size, hidden_size), jnp.float32, -s_h, s_h)
    bh = jax.random.uniform(k3, (1, hidden_size), jnp.float32, -s_h, s_h)
    wo = jax.random.uniform(k4, (hidden_size, num_classes), jnp.float32, -s_h, s_h)
    bo = jax.random.uniform(k5, (1, num_classes), jnp.float32, -s_h, s_h)
    return wi, wh, bh, wo, bo


def reference_step(x, hidden, params):
    """Pure-JAX reference matching the PyTorch forward (one step)."""
    wi, wh, bh, wo, bo = params
    h_new = jnp.tanh(x @ wi + hidden @ wh + bh)
    return h_new @ wo + bo, h_new


def reference_sequence(x_seq, h0, params):
    """Pure-JAX scan over reference_step."""
    def step(h, x):
        logits, h_new = reference_step(x, h, params)
        return h_new, logits
    h_final, logits_seq = jax.lax.scan(step, h0, x_seq)
    return logits_seq, h_final


if __name__ == "__main__":
    key = jax.random.PRNGKey(0)
    kp, kx = jax.random.split(key, 2)

    params = init_params(kp, VOCAB_SIZE, HIDDEN_SIZE, NUM_CLASSES)

    x_seq = jax.random.normal(kx, (SEQ_LEN, BATCH, VOCAB_SIZE), jnp.float32)
    h0 = jnp.zeros((BATCH, HIDDEN_SIZE), jnp.float32)   # init_hidden()

    # Fused-sequence path (single pallas_call for all SEQ_LEN steps).
    logits_seq, h_final = simple_rnn_sequence(x_seq, h0, params)
    jax.block_until_ready((logits_seq, h_final))

    ref_logits_seq, ref_h_final = reference_sequence(x_seq, h0, params)
    assert logits_seq.shape == (SEQ_LEN, BATCH, NUM_CLASSES)
    assert h_final.shape == (BATCH, HIDDEN_SIZE)
    assert jnp.allclose(logits_seq, ref_logits_seq, atol=1e-4, rtol=1e-4)
    assert jnp.allclose(h_final, ref_h_final, atol=1e-4, rtol=1e-4)

    # Single-step path (matches the PyTorch module's forward exactly).
    logits1, h1 = simple_rnn_step(x_seq[0], h0, params)
    jax.block_until_ready((logits1, h1))
    ref_logits1, ref_h1 = reference_step(x_seq[0], h0, params)
    assert jnp.allclose(logits1, ref_logits1, atol=1e-4, rtol=1e-4)
    assert jnp.allclose(h1, ref_h1, atol=1e-4, rtol=1e-4)

    print("KERNEL_OK")
</pallas_src>

<mosaic_0001>
module attributes {stable_mosaic.version = 11 : i64} {
  func.func @rnn_seq_kernel(%arg0: i32, %arg1: memref<1x8x128xf32, #tpu.memory_space<vmem>>, %arg2: memref<8x128xf32, #tpu.memory_space<vmem>>, %arg3: memref<128x128xf32, #tpu.memory_space<vmem>>, %arg4: memref<128x128xf32, #tpu.memory_space<vmem>>, %arg5: memref<8x128xf32, #tpu.memory_space<vmem>>, %arg6: memref<128x128xf32, #tpu.memory_space<vmem>>, %arg7: memref<8x128xf32, #tpu.memory_space<vmem>>, %arg8: memref<1x8x128xf32, #tpu.memory_space<vmem>>, %arg9: memref<8x128xf32, #tpu.memory_space<vmem>>) attributes {dimension_semantics = [#tpu.dimension_semantics<arbitrary>], iteration_bounds = array<i64: 8>, scalar_prefetch = 0 : i64, scratch_operands = 0 : i64, tpu.core_type = #tpu.core_type<tc>, window_params = [{transform_indices = @transform_0, window_bounds = array<i64: 1, 8, 128>}, {pipeline_mode = #tpu.pipeline_mode<synchronous>, transform_indices = @transform_1, window_bounds = array<i64: 8, 128>}, {pipeline_mode = #tpu.pipeline_mode<synchronous>, transform_indices = @transform_2, window_bounds = array<i64: 128, 128>}, {pipeline_mode = #tpu.pipeline_mode<synchronous>, transform_indices = @transform_3, window_bounds = array<i64: 128, 128>}, {pipeline_mode = #tpu.pipeline_mode<synchronous>, transform_indices = @transform_4, window_bounds = array<i64: 8, 128>}, {pipeline_mode = #tpu.pipeline_mode<synchronous>, transform_indices = @transform_5, window_bounds = array<i64: 128, 128>}, {pipeline_mode = #tpu.pipeline_mode<synchronous>, transform_indices = @transform_6, window_bounds = array<i64: 8, 128>}, {transform_indices = @transform_7, window_bounds = array<i64: 1, 8, 128>}, {pipeline_mode = #tpu.pipeline_mode<synchronous>, transform_indices = @transform_8, window_bounds = array<i64: 8, 128>}]} {
    %c0_i32 = arith.constant 0 : i32
    %0 = arith.cmpi eq, %arg0, %c0_i32 : i32
    %1 = arith.extui %0 : i1 to i32
    %c0_i32_0 = arith.constant 0 : i32
    %2 = arith.cmpi ne, %1, %c0_i32_0 : i32
    scf.if %2 {
      %c0_22 = arith.constant 0 : index
      %c0_23 = arith.constant 0 : index
      %22 = vector.load %arg2[%c0_22, %c0_23] : memref<8x128xf32, #tpu.memory_space<vmem>>, vector<8x128xf32>
      %c0_24 = arith.constant 0 : index
      %c0_25 = arith.constant 0 : index
      %23 = vector.load %arg9[%c0_24, %c0_25] : memref<8x128xf32, #tpu.memory_space<vmem>>, vector<8x128xf32>
      tpu.vector_store %arg9[%c0_24, %c0_25], %22 {strides = array<i32>} : memref<8x128xf32, #tpu.memory_space<vmem>>, vector<8x128xf32>,
    } else {
    }
    %c0 = arith.constant 0 : index
    %c0_1 = arith.constant 0 : index
    %3 = vector.load %arg9[%c0, %c0_1] : memref<8x128xf32, #tpu.memory_space<vmem>>, vector<8x128xf32>
    %c0_2 = arith.constant 0 : index
    %c0_3 = arith.constant 0 : index
    %c0_4 = arith.constant 0 : index
    %4 = vector.load %arg1[%c0_2, %c0_3, %c0_4] : memref<1x8x128xf32, #tpu.memory_space<vmem>>, vector<1x8x128xf32>
    %5 = vector.shape_cast %4 : vector<1x8x128xf32> to vector<8x128xf32>
    %c0_5 = arith.constant 0 : index
    %c0_6 = arith.constant 0 : index
    %6 = vector.load %arg3[%c0_5, %c0_6] : memref<128x128xf32, #tpu.memory_space<vmem>>, vector<128x128xf32>
    %cst = arith.constant dense<0.000000e+00> : vector<8x128xf32>
    %7 = tpu.matmul %5, %6, %cst {dimension_numbers = #tpu.dot_dimension_numbers<[1], [0], [0], [1], [0, 0, 1, 1], [], []>} : vector<8x128xf32>, vector<128x128xf32>, vector<8x128xf32> -> vector<8x128xf32>
    %c0_7 = arith.constant 0 : index
    %c0_8 = arith.constant 0 : index
    %8 = vector.load %arg4[%c0_7, %c0_8] : memref<128x128xf32, #tpu.memory_space<vmem>>, vector<128x128xf32>
    %cst_9 = arith.constant dense<0.000000e+00> : vector<8x128xf32>
    %9 = tpu.matmul %3, %8, %cst_9 {dimension_numbers = #tpu.dot_dimension_numbers<[1], [0], [0], [1], [0, 0, 1, 1], [], []>} : vector<8x128xf32>, vector<128x128xf32>, vector<8x128xf32> -> vector<8x128xf32>
    %10 = arith.addf %7, %9 : vector<8x128xf32>
    %c0_10 = arith.constant 0 : index
    %c0_11 = arith.constant 0 : index
    %11 = vector.load %arg5[%c0_10, %c0_11] : memref<8x128xf32, #tpu.memory_space<vmem>>, vector<8x128xf32>
    %12 = arith.addf %10, %11 : vector<8x128xf32>
    %13 = math.tanh %12 : vector<8x128xf32>
    %c0_12 = arith.constant 0 : index
    %c0_13 = arith.constant 0 : index
    %14 = vector.load %arg9[%c0_12, %c0_13] : memref<8x128xf32, #tpu.memory_space<vmem>>, vector<8x128xf32>
    tpu.vector_store %arg9[%c0_12, %c0_13], %13 {strides = array<i32>} : memref<8x128xf32, #tpu.memory_space<vmem>>, vector<8x128xf32>,
    %c0_14 = arith.constant 0 : index
    %c0_15 = arith.constant 0 : index
    %15 = vector.load %arg6[%c0_14, %c0_15] : memref<128x128xf32, #tpu.memory_space<vmem>>, vector<128x128xf32>
    %cst_16 = arith.constant dense<0.000000e+00> : vector<8x128xf32>
    %16 = tpu.matmul %13, %15, %cst_16 {dimension_numbers = #tpu.dot_dimension_numbers<[1], [0], [0], [1], [0, 0, 1, 1], [], []>} : vector<8x128xf32>, vector<128x128xf32>, vector<8x128xf32> -> vector<8x128xf32>
    %c0_17 = arith.constant 0 : index
    %c0_18 = arith.constant 0 : index
    %17 = vector.load %arg7[%c0_17, %c0_18] : memref<8x128xf32, #tpu.memory_space<vmem>>, vector<8x128xf32>
    %18 = arith.addf %16, %17 : vector<8x128xf32>
    %c0_19 = arith.constant 0 : index
    %c0_20 = arith.constant 0 : index
    %c0_21 = arith.constant 0 : index
    %19 = vector.load %arg8[%c0_19, %c0_20, %c0_21] : memref<1x8x128xf32, #tpu.memory_space<vmem>>, vector<1x8x128xf32>
    %20 = vector.shape_cast %19 : vector<1x8x128xf32> to vector<8x128xf32>
    %21 = vector.shape_cast %18 : vector<8x128xf32> to vector<1x8x128xf32>
    tpu.vector_store %arg8[%c0_19, %c0_20, %c0_21], %21 {strides = array<i32>} : memref<1x8x128xf32, #tpu.memory_space<vmem>>, vector<1x8x128xf32>,
    return
  }
  func.func @transform_0(%arg0: i32) -> (i32, i32, i32) {
    %c0_i32 = arith.constant 0 : i32
    %c0_i32_0 = arith.constant 0 : i32
    %c0_i32_1 = arith.constant 0 : i32
    return %arg0, %c0_i32, %c0_i32_0 : i32, i32, i32
  }
  func.func @transform_1(%arg0: i32) -> (i32, i32) {
    %c0_i32 = arith.constant 0 : i32
    %c0_i32_0 = arith.constant 0 : i32
    %c0_i32_1 = arith.constant 0 : i32
    return %c0_i32, %c0_i32_0 : i32, i32
  }
  func.func @transform_2(%arg0: i32) -> (i32, i32) {
    %c0_i32 = arith.constant 0 : i32
    %c0_i32_0 = arith.constant 0 : i32
    %c0_i32_1 = arith.constant 0 : i32
    return %c0_i32, %c0_i32_0 : i32, i32
  }
  func.func @transform_3(%arg0: i32) -> (i32, i32) {
    %c0_i32 = arith.constant 0 : i32
    %c0_i32_0 = arith.constant 0 : i32
    %c0_i32_1 = arith.constant 0 : i32
    return %c0_i32, %c0_i32_0 : i32, i32
  }
  func.func @transform_4(%arg0: i32) -> (i32, i32) {
    %c0_i32 = arith.constant 0 : i32
    %c0_i32_0 = arith.constant 0 : i32
    %c0_i32_1 = arith.constant 0 : i32
    return %c0_i32, %c0_i32_0 : i32, i32
  }
  func.func @transform_5(%arg0: i32) -> (i32, i32) {
    %c0_i32 = arith.constant 0 : i32
    %c0_i32_0 = arith.constant 0 : i32
    %c0_i32_1 = arith.constant 0 : i32
    return %c0_i32, %c0_i32_0 : i32, i32
  }
  func.func @transform_6(%arg0: i32) -> (i32, i32) {
    %c0_i32 = arith.constant 0 : i32
    %c0_i32_0 = arith.constant 0 : i32
    %c0_i32_1 = arith.constant 0 : i32
    return %c0_i32, %c0_i32_0 : i32, i32
  }
  func.func @transform_7(%arg0: i32) -> (i32, i32, i32) {
    %c0_i32 = arith.constant 0 : i32
    %c0_i32_0 = arith.constant 0 : i32
    %c0_i32_1 = arith.constant 0 : i32
    return %arg0, %c0_i32, %c0_i32_0 : i32, i32, i32
  }
  func.func @transform_8(%arg0: i32) -> (i32, i32) {
    %c0_i32 = arith.constant 0 : i32
    %c0_i32_0 = arith.constant 0 : i32
    %c0_i32_1 = arith.constant 0 : i32
    return %c0_i32, %c0_i32_0 : i32, i32
  }
}

</mosaic_0001>

<llo_original>
// kernel: _simple_rnn_sequence_impl.1
$region0: #{_simple_rnn_sequence_impl.1}
  #allocation0 [shape = 'u32[]', space=smem, size = 0x4, offset = 0x4, fixed_abs, tag = 'smem constant byte address 0x4 - core index']
  #allocation1 [shape = 'u32[72,128]{1,0:T(1,128)}', space=vmem, size = 0x9000, scoped, tag = 'internal scratch']
  %s0 = inlined_call_operand.vmem [shape: f32[8,8,128], index: 0, kind: input, shape index: {}]
  %s1 = inlined_call_operand.vmem [shape: f32[8,128], index: 1, kind: input, shape index: {}, may-alias: {1,8}]
  %s2 = inlined_call_operand.vmem [shape: f32[128,128], index: 2, kind: input, shape index: {}]
  %s3 = inlined_call_operand.vmem [shape: f32[128,128], index: 3, kind: input, shape index: {}]
  %s4 = inlined_call_operand.vmem [shape: f32[8,128], index: 4, kind: input, shape index: {}]
  %s5 = inlined_call_operand.vmem [shape: f32[128,128], index: 5, kind: input, shape index: {}]
  %s6 = inlined_call_operand.vmem [shape: f32[8,128], index: 6, kind: input, shape index: {}]
  %s7 = inlined_call_operand.vmem [shape: f32[8,8,128], index: 7, kind: output, shape index: {0}]
  %s8 = inlined_call_operand.vmem [shape: f32[8,128], index: 8, kind: output, shape index: {1}, may-alias: {1,8}]
  %9 = xla_tuple %s7, %s8
  %s10 = sld [smem:[#allocation0]]
  $region73: #{_simple_rnn_sequence_impl.1} parent=0
    _
  %s12 = ssub.s32 1, %s10
  %s13 = scalar_select 0, %s12, %s10
  loop: start=0, step=1, limit=10
  $region2: #{_simple_rnn_sequence_impl.1} parent=0 // loop_pre_header
    _
  $region3: #{_simple_rnn_sequence_impl.1} parent=0 // loop_header
    %s15 = sphi 0, %s19
    %p16 = scmp.ge.s32.totalorder %s15, 10
    %s25 = sphi 0, %s27
    %s28 = sphi 0, %s25
    %s29 = sphi 0, %s28
    %s45 = sphi 0, %s29
    %s49 = sphi 0, %s49
    %s51 = sphi 0, %s49
    %s52 = sphi 0, %s51
    %s66 = sphi 0, %s52
    %s70 = sphi 0, %s70
    %s72 = sphi 0, %s70
    %s73 = sphi 0, %s72
    %s87 = sphi 0, %s73
    %s91 = sphi 0, %s91
    %s93 = sphi 0, %s91
    %s94 = sphi 0, %s93
    %s108 = sphi 0, %s94
    %s112 = sphi 0, %s112
    %s114 = sphi 0, %s112
    %s115 = sphi 0, %s114
    %s129 = sphi 0, %s115
    %s133 = sphi 0, %s133
    %s135 = sphi 0, %s133
    %s136 = sphi 0, %s135
    %s150 = sphi 0, %s136
    %s154 = sphi 0, %s154
    %s156 = sphi 0, %s154
    %s157 = sphi 0, %s156
    %s171 = sphi 0, %s157
    %s177 = sphi 0, %s179
    %s180 = sphi 0, %s177
    %s181 = sphi 0, %s180
    %s197 = sphi 0, %s181
    %s201 = sphi 0, %s201
    %s203 = sphi 0, %s201
    %s204 = sphi 0, %s203
    %s218 = sphi 0, %s204
  $region4: #{_simple_rnn_sequence_impl.1} parent=0 // loop_header_branch
    %18 = sbr.rel (%p16) target = $region8
  $region5: #{_simple_rnn_sequence_impl.1} parent=0 // loop_body
    %s20 = ssub.s32 %s15, 1
    %s21 = ssub.s32 %s15, 2
    %s22 = sadd.s32 %s15, 1
    %s23 = ssub.s32 %s15, %s22
    %p24 = scmp.eq.s32.totalorder %s23, 0
    %s26 = sadd.s32 %s25, 1
    %s27 = scalar_select %p24, %s25, %s26
    %p30 = pneg %p24
    %p31 = scmp.eq.s32.totalorder %s15, 7
    %p32 = por %p30, %p31
    %p33 = scmp.ne.s32.totalorder %s25, %s28
    %p34 = scmp.eq.s32.totalorder %s15, 0
    %p35 = por %p33, %p34
    %p36 = scmp.ne.s32.totalorder %s25, %s28
    %p37 = scmp.eq.s32.totalorder %s20, 7
    %p38 = por %p36, %p37
    %p39 = scmp.ne.s32.totalorder %s28, %s29
    %p40 = scmp.eq.s32.totalorder %s20, 0
    %p41 = por %p39, %p40
    %p42 = scmp.ne.s32.totalorder %s28, %s29
    %p43 = scmp.eq.s32.totalorder %s21, 7
    %p44 = por %p42, %p43
    %p46 = scmp.ne.s32.totalorder %s29, %s45
    %p47 = scmp.eq.s32.totalorder %s21, 0
    %p48 = por %p46, %p47
    %s50 = sadd.s32 %s49, 1
    %p53 = scmp.eq.s32.totalorder %s15, 7
    %p54 = scmp.ne.s32.totalorder %s49, %s51
    %p55 = scmp.eq.s32.totalorder %s15, 0
    %p56 = por %p54, %p55
    %p57 = scmp.ne.s32.totalorder %s49, %s51
    %p58 = scmp.eq.s32.totalorder %s20, 7
    %p59 = por %p57, %p58
    %p60 = scmp.ne.s32.totalorder %s51, %s52
    %p61 = scmp.eq.s32.totalorder %s20, 0
    %p62 = por %p60, %p61
    %p63 = scmp.ne.s32.totalorder %s51, %s52
    %p64 = scmp.eq.s32.totalorder %s21, 7
    %p65 = por %p63, %p64
    %p67 = scmp.ne.s32.totalorder %s52, %s66
    %p68 = scmp.eq.s32.totalorder %s21, 0
    %p69 = por %p67, %p68
    %s71 = sadd.s32 %s70, 1
    %p74 = scmp.eq.s32.totalorder %s15, 7
    %p75 = scmp.ne.s32.totalorder %s70, %s72
    %p76 = scmp.eq.s32.totalorder %s15, 0
    %p77 = por %p75, %p76
    %p78 = scmp.ne.s32.totalorder %s70, %s72
    %p79 = scmp.eq.s32.totalorder %s20, 7
    %p80 = por %p78, %p79
    %p81 = scmp.ne.s32.totalorder %s72, %s73
    %p82 = scmp.eq.s32.totalorder %s20, 0
    %p83 = por %p81, %p82
    %p84 = scmp.ne.s32.totalorder %s72, %s73
    %p85 = scmp.eq.s32.totalorder %s21, 7
    %p86 = por %p84, %p85
    %p88 = scmp.ne.s32.totalorder %s73, %s87
    %p89 = scmp.eq.s32.totalorder %s21, 0
    %p90 = por %p88, %p89
    %s92 = sadd.s32 %s91, 1
    %p95 = scmp.eq.s32.totalorder %s15, 7
    %p96 = scmp.ne.s32.totalorder %s91, %s93
    %p97 = scmp.eq.s32.totalorder %s15, 0
    %p98 = por %p96, %p97
    %p99 = scmp.ne.s32.totalorder %s91, %s93
    %p100 = scmp.eq.s32.totalorder %s20, 7
    %p101 = por %p99, %p100
    %p102 = scmp.ne.s32.totalorder %s93, %s94
    %p103 = scmp.eq.s32.totalorder %s20, 0
    %p104 = por %p102, %p103
    %p105 = scmp.ne.s32.totalorder %s93, %s94
    %p106 = scmp.eq.s32.totalorder %s21, 7
    %p107 = por %p105, %p106
    %p109 = scmp.ne.s32.totalorder %s94, %s108
    %p110 = scmp.eq.s32.totalorder %s21, 0
    %p111 = por %p109, %p110
    %s113 = sadd.s32 %s112, 1
    %p116 = scmp.eq.s32.totalorder %s15, 7
    %p117 = scmp.ne.s32.totalorder %s112, %s114
    %p118 = scmp.eq.s32.totalorder %s15, 0
    %p119 = por %p117, %p118
    %p120 = scmp.ne.s32.totalorder %s112, %s114
    %p121 = scmp.eq.s32.totalorder %s20, 7
    %p122 = por %p120, %p121
    %p123 = scmp.ne.s32.totalorder %s114, %s115
    %p124 = scmp.eq.s32.totalorder %s20, 0
    %p125 = por %p123, %p124
    %p126 = scmp.ne.s32.totalorder %s114, %s115
    %p127 = scmp.eq.s32.totalorder %s21, 7
    %p128 = por %p126, %p127
    %p130 = scmp.ne.s32.totalorder %s115, %s129
    %p131 = scmp.eq.s32.totalorder %s21, 0
    %p132 = por %p130, %p131
    %s134 = sadd.s32 %s133, 1
    %p137 = scmp.eq.s32.totalorder %s15, 7
    %p138 = scmp.ne.s32.totalorder %s133, %s135
    %p139 = scmp.eq.s32.totalorder %s15, 0
    %p140 = por %p138, %p139
    %p141 = scmp.ne.s32.totalorder %s133, %s135
    %p142 = scmp.eq.s32.totalorder %s20, 7
    %p143 = por %p141, %p142
    %p144 = scmp.ne.s32.totalorder %s135, %s136
    %p145 = scmp.eq.s32.totalorder %s20, 0
    %p146 = por %p144, %p145
    %p147 = scmp.ne.s32.totalorder %s135, %s136
    %p148 = scmp.eq.s32.totalorder %s21, 7
    %p149 = por %p147, %p148
    %p151 = scmp.ne.s32.totalorder %s136, %s150
    %p152 = scmp.eq.s32.totalorder %s21, 0
    %p153 = por %p151, %p152
    %s155 = sadd.s32 %s154, 1
    %p158 = scmp.eq.s32.totalorder %s15, 7
    %p159 = scmp.ne.s32.totalorder %s154, %s156
    %p160 = scmp.eq.s32.totalorder %s15, 0
    %p161 = por %p159, %p160
    %p162 = scmp.ne.s32.totalorder %s154, %s156
    %p163 = scmp.eq.s32.totalorder %s20, 7
    %p164 = por %p162, %p163
    %p165 = scmp.ne.s32.totalorder %s156, %s157
    %p166 = scmp.eq.s32.totalorder %s20, 0
    %p167 = por %p165, %p166
    %p168 = scmp.ne.s32.totalorder %s156, %s157
    %p169 = scmp.eq.s32.totalorder %s21, 7
    %p170 = por %p168, %p169
    %p172 = scmp.ne.s32.totalorder %s157, %s171
    %p173 = scmp.eq.s32.totalorder %s21, 0
    %p174 = por %p172, %p173
    %s175 = ssub.s32 %s15, %s22
    %p176 = scmp.eq.s32.totalorder %s175, 0
    %s178 = sadd.s32 %s177, 1
    %s179 = scalar_select %p176, %s177, %s178
    %p182 = pneg %p176
    %p183 = scmp.eq.s32.totalorder %s15, 7
    %p184 = por %p182, %p183
    %p185 = scmp.ne.s32.totalorder %s177, %s180
    %p186 = scmp.eq.s32.totalorder %s15, 0
    %p187 = por %p185, %p186
    %p188 = scmp.ne.s32.totalorder %s177, %s180
    %p189 = scmp.eq.s32.totalorder %s20, 7
    %p190 = por %p188, %p189
    %p191 = scmp.ne.s32.totalorder %s180, %s181
    %p192 = scmp.eq.s32.totalorder %s20, 0
    %p193 = por %p191, %p192
    %p194 = scmp.ne.s32.totalorder %s180, %s181
    %p195 = scmp.eq.s32.totalorder %s21, 7
    %p196 = por %p194, %p195
    %p198 = scmp.ne.s32.totalorder %s181, %s197
    %p199 = scmp.eq.s32.totalorder %s21, 0
    %p200 = por %p198, %p199
    %s202 = sadd.s32 %s201, 1
    %p205 = scmp.eq.s32.totalorder %s15, 7
    %p206 = scmp.ne.s32.totalorder %s201, %s203
    %p207 = scmp.eq.s32.totalorder %s15, 0
    %p208 = por %p206, %p207
    %p209 = scmp.ne.s32.totalorder %s201, %s203
    %p210 = scmp.eq.s32.totalorder %s20, 7
    %p211 = por %p209, %p210
    %p212 = scmp.ne.s32.totalorder %s203, %s204
    %p213 = scmp.eq.s32.totalorder %s20, 0
    %p214 = por %p212, %p213
    %p215 = scmp.ne.s32.totalorder %s203, %s204
    %p216 = scmp.eq.s32.totalorder %s21, 7
    %p217 = por %p215, %p216
    %p219 = scmp.ne.s32.totalorder %s204, %s218
    %p220 = scmp.eq.s32.totalorder %s21, 0
    %p221 = por %p219, %p220
    %p222 = scmp.le.s32.totalorder 1, %s15
    %p223 = scmp.lt.s32.totalorder %s15, 9
    %p224 = pnand %p222, %p223
    %p225 = pneg %p224
    // Predicated region
    $region9: #{_simple_rnn_sequence_impl.1} parent=5 // pred_check
      _
    $region10: #{_simple_rnn_sequence_impl.1} parent=5 // pred_check_branch
      %227 = sbr.rel (%p224) target = $region12
    $region11: #{_simple_rnn_sequence_impl.1} parent=5 // pred_region
      %s228 = ssub.s32 %s15, 1
      // Predicated region
      $region13: #{_simple_rnn_sequence_impl.1} parent=11 // pred_check
        %p229 = pneg %p62
      $region14: #{_simple_rnn_sequence_impl.1} parent=11 // pred_check_branch
        %231 = sbr.rel (%p229) target = $region16
      $region15: #{_simple_rnn_sequence_impl.1} parent=11 // pred_region
        _
      $region16: #{_simple_rnn_sequence_impl.1} parent=11 // pred_fallthru
        _
      // Predicated region
      $region17: #{_simple_rnn_sequence_impl.1} parent=11 // pred_check
        %p232 = pneg %p83
      $region18: #{_simple_rnn_sequence_impl.1} parent=11 // pred_check_branch
        %234 = sbr.rel (%p232) target = $region20
      $region19: #{_simple_rnn_sequence_impl.1} parent=11 // pred_region
        _
      $region20: #{_simple_rnn_sequence_impl.1} parent=11 // pred_fallthru
        _
      // Predicated region
      $region21: #{_simple_rnn_sequence_impl.1} parent=11 // pred_check
        %p235 = pneg %p104
      $region22: #{_simple_rnn_sequence_impl.1} parent=11 // pred_check_branch
        %237 = sbr.rel (%p235) target = $region24
      $region23: #{_simple_rnn_sequence_impl.1} parent=11 // pred_region
        _
      $region24: #{_simple_rnn_sequence_impl.1} parent=11 // pred_fallthru
        _
      // Predicated region
      $region25: #{_simple_rnn_sequence_impl.1} parent=11 // pred_check
        %p238 = pneg %p125
      $region26: #{_simple_rnn_sequence_impl.1} parent=11 // pred_check_branch
        %240 = sbr.rel (%p238) target = $region28
      $region27: #{_simple_rnn_sequence_impl.1} parent=11 // pred_region
        _
      $region28: #{_simple_rnn_sequence_impl.1} parent=11 // pred_fallthru
        _
      // Predicated region
      $region29: #{_simple_rnn_sequence_impl.1} parent=11 // pred_check
        %p241 = pneg %p146
      $region30: #{_simple_rnn_sequence_impl.1} parent=11 // pred_check_branch
        %243 = sbr.rel (%p241) target = $region32
      $region31: #{_simple_rnn_sequence_impl.1} parent=11 // pred_region
        _
      $region32: #{_simple_rnn_sequence_impl.1} parent=11 // pred_fallthru
        _
      // Predicated region
      $region33: #{_simple_rnn_sequence_impl.1} parent=11 // pred_check
        %p244 = pneg %p167
      $region34: #{_simple_rnn_sequence_impl.1} parent=11 // pred_check_branch
        %246 = sbr.rel (%p244) target = $region36
      $region35: #{_simple_rnn_sequence_impl.1} parent=11 // pred_region
        _
      $region36: #{_simple_rnn_sequence_impl.1} parent=11 // pred_fallthru
        _
    $region12: #{_simple_rnn_sequence_impl.1} parent=5 // pred_fallthru
      _
    %p247 = scmp.lt.s32.totalorder %s15, 8
    // Predicated region
    $region37: #{_simple_rnn_sequence_impl.1} parent=5 // pred_check
      %p248 = pneg %p247
    $region38: #{_simple_rnn_sequence_impl.1} parent=5 // pred_check_branch
      %250 = sbr.rel (%p248) target = $region40
    $region39: #{_simple_rnn_sequence_impl.1} parent=5 // pred_region
      // Predicated region
      $region41: #{_simple_rnn_sequence_impl.1} parent=39 // pred_check
        %p251 = pneg %p35
      $region42: #{_simple_rnn_sequence_impl.1} parent=39 // pred_check_branch
        %253 = sbr.rel (%p251) target = $region44
      $region43: #{_simple_rnn_sequence_impl.1} parent=39 // pred_region
        %p254 = scmp.lt.s32.totalorder %s15, 7
        %s255 = scalar_select %p254, %s15, 7
        %s256 = smul.addr %s255, 8
        %s257 = scalar_lea.vmem %s0, %s256
      $region44: #{_simple_rnn_sequence_impl.1} parent=39 // pred_fallthru
        _
    $region40: #{_simple_rnn_sequence_impl.1} parent=5 // pred_fallthru
      _
    %p258 = scmp.le.s32.totalorder 1, %s15
    %p259 = scmp.lt.s32.totalorder %s15, 9
    %p260 = pnand %p258, %p259
    %p261 = pneg %p260
    // Predicated region
    $region45: #{_simple_rnn_sequence_impl.1} parent=5 // pred_check
      _
    $region46: #{_simple_rnn_sequence_impl.1} parent=5 // pred_check_branch
      %263 = sbr.rel (%p260) target = $region48
    $region47: #{_simple_rnn_sequence_impl.1} parent=5 // pred_region
      %s264 = ssub.s32 %s15, 1
      %p265 = scmp.lt.s32.totalorder %s20, 7
      %s266 = scalar_select %p265, %s20, 7
      %s267 = smul.addr %s266, 8
      %s268 = scalar_lea.vmem %s0, %s267
      %p269 = pneg %p41
      %p270 = pneg %p38
      %p271 = pneg %p62
      %p272 = pneg %p59
      %p273 = pneg %p83
      %p274 = pneg %p80
      %p275 = pneg %p104
      %p276 = pneg %p101
      %p277 = pneg %p125
      %p278 = pneg %p122
      %p279 = pneg %p146
      %p280 = pneg %p143
      %p281 = pneg %p167
      %p282 = pneg %p164
      %p283 = pneg %p193
      %p284 = pneg %p190
      %p285 = scmp.lt.s32.totalorder %s20, 7
      %s286 = scalar_select %p285, %s20, 7
      %s287 = smul.addr %s286, 8
      %s288 = scalar_lea.vmem %s7, %s287
      %p289 = pneg %p214
      %p290 = pneg %p211
      %p291 = scmp.lt.s32.totalorder %s20, 7
      %s292 = scalar_select %p291, %s20, 7
      %s293 = smul.addr %s292, 8
      %s294 = scalar_lea.vmem %s0, %s293
      %p295 = scmp.lt.s32.totalorder %s20, 7
      %s296 = scalar_select %p295, %s20, 7
      %s297 = smul.addr %s296, 8
      %s298 = scalar_lea.vmem %s7, %s297
      %p299 = scmp.eq.s32.totalorder %s20, 0
      // Predicated region
      $region49: #{_simple_rnn_sequence_impl.1} parent=47 // pred_check
        %p300 = pneg %p299
      $region50: #{_simple_rnn_sequence_impl.1} parent=47 // pred_check_branch
        %302 = sbr.rel (%p300) target = $region52
      $region51: #{_simple_rnn_sequence_impl.1} parent=47 // pred_region
        %v303 = vld [vmem:[%s1] sm:$0xff]
        %304 = vst [vmem:[%s8] sm:$0xff] %v303
      $region52: #{_simple_rnn_sequence_impl.1} parent=47 // pred_fallthru
        _
      %v305 = vld [vmem:[%s8] sm:$0xff]
      %v306 = vld [vmem:[%s294] sm:$0xff]
      %v307 = vld [vmem:[%s2] sm:$0xff]
      %v308 = vld [vmem:[%s2 + $0x8] sm:$0xff]
      %v309 = vld [vmem:[%s2 + $0x10] sm:$0xff]
      %v310 = vld [vmem:[%s2 + $0x18] sm:$0xff]
      %v311 = vld [vmem:[%s2 + $0x20] sm:$0xff]
      %v312 = vld [vmem:[%s2 + $0x28] sm:$0xff]
      %v313 = vld [vmem:[%s2 + $0x30] sm:$0xff]
      %v314 = vld [vmem:[%s2 + $0x38] sm:$0xff]
      %v315 = vld [vmem:[%s2 + $0x40] sm:$0xff]
      %v316 = vld [vmem:[%s2 + $0x48] sm:$0xff]
      %v317 = vld [vmem:[%s2 + $0x50] sm:$0xff]
      %v318 = vld [vmem:[%s2 + $0x58] sm:$0xff]
      %v319 = vld [vmem:[%s2 + $0x60] sm:$0xff]
      %v320 = vld [vmem:[%s2 + $0x68] sm:$0xff]
      %v321 = vld [vmem:[%s2 + $0x70] sm:$0xff]
      %v322 = vld [vmem:[%s2 + $0x78] sm:$0xff]
      %v323 = vld [vmem:[%s3] sm:$0xff]
      %v324 = vld [vmem:[%s3 + $0x8] sm:$0xff]
      %v325 = vld [vmem:[%s3 + $0x10] sm:$0xff]
      %v326 = vld [vmem:[%s3 + $0x18] sm:$0xff]
      %v327 = vld [vmem:[%s3 + $0x20] sm:$0xff]
      %v328 = vld [vmem:[%s3 + $0x28] sm:$0xff]
      %v329 = vld [vmem:[%s3 + $0x30] sm:$0xff]
      %v330 = vld [vmem:[%s3 + $0x38] sm:$0xff]
      %v331 = vld [vmem:[%s3 + $0x40] sm:$0xff]
      %v332 = vld [vmem:[%s3 + $0x48] sm:$0xff]
      %v333 = vld [vmem:[%s3 + $0x50] sm:$0xff]
      %v334 = vld [vmem:[%s3 + $0x58] sm:$0xff]
      %v335 = vld [vmem:[%s3 + $0x60] sm:$0xff]
      %v336 = vld [vmem:[%s3 + $0x68] sm:$0xff]
      %v337 = vld [vmem:[%s3 + $0x70] sm:$0xff]
      %v338 = vld [vmem:[%s3 + $0x78] sm:$0xff]
      %339 = vmatpush.msra.mxu0 %v338
      %340 = vmatpush.msra.mxu0 %v337
      %341 = vmatpush.msra.mxu0 %v336
      %342 = vmatpush.msra.mxu0 %v335
      %343 = vmatpush.msra.mxu0 %v334
      %344 = vmatpush.msra.mxu0 %v333
      %345 = vmatpush.msra.mxu0 %v332
      %346 = vmatpush.msra.mxu0 %v331
      %347 = vmatpush.msra.mxu0 %v330
      %348 = vmatpush.msra.mxu0 %v329
      %349 = vmatpush.msra.mxu0 %v328
      %350 = vmatpush.msra.mxu0 %v327
      %351 = vmatpush.msra.mxu0 %v326
      %352 = vmatpush.msra.mxu0 %v325
      %353 = vmatpush.msra.mxu0 %v324
      %354 = vmatpush.msra.mxu0 %v323
      %355 = vmatmul.f32.gmra.mxu0 %v305
      %v356 = vpop.f32.mrf.mxu0
      %v357 = vadd.f32 0.0, %v356
      %358 = vdwg.mxu0
      %359 = vmatpush.msra.mxu0 %v322
      %360 = vmatpush.msra.mxu0 %v321
      %361 = vmatpush.msra.mxu0 %v320
      %362 = vmatpush.msra.mxu0 %v319
      %363 = vmatpush.msra.mxu0 %v318
      %364 = vmatpush.msra.mxu0 %v317
      %365 = vmatpush.msra.mxu0 %v316
      %366 = vmatpush.msra.mxu0 %v315
      %367 = vmatpush.msra.mxu0 %v314
      %368 = vmatpush.msra.mxu0 %v313
      %369 = vmatpush.msra.mxu0 %v312
      %370 = vmatpush.msra.mxu0 %v311
      %371 = vmatpush.msra.mxu0 %v310
      %372 = vmatpush.msra.mxu0 %v309
      %373 = vmatpush.msra.mxu0 %v308
      %374 = vmatpush.msra.mxu0 %v307
      %375 = vmatmul.f32.gmra.mxu0 %v306
      %v376 = vpop.f32.mrf.mxu0
      %v377 = vadd.f32 %v357, %v376
      %378 = vdwg.mxu0
      %v379 = vld [vmem:[%s4] sm:$0xff]
      %v380 = vadd.f32 %v377, %v379
      %v381 = vtanh.pop %v380
      %382 = vst [vmem:[%s8] sm:$0xff] %v381
      %v383 = vld [vmem:[%s5] sm:$0xff]
      %v384 = vld [vmem:[%s5 + $0x8] sm:$0xff]
      %v385 = vld [vmem:[%s5 + $0x10] sm:$0xff]
      %v386 = vld [vmem:[%s5 + $0x18] sm:$0xff]
      %v387 = vld [vmem:[%s5 + $0x20] sm:$0xff]
      %v388 = vld [vmem:[%s5 + $0x28] sm:$0xff]
      %v389 = vld [vmem:[%s5 + $0x30] sm:$0xff]
      %v390 = vld [vmem:[%s5 + $0x38] sm:$0xff]
      %v391 = vld [vmem:[%s5 + $0x40] sm:$0xff]
      %v392 = vld [vmem:[%s5 + $0x48] sm:$0xff]
      %v393 = vld [vmem:[%s5 + $0x50] sm:$0xff]
      %v394 = vld [vmem:[%s5 + $0x58] sm:$0xff]
      %v395 = vld [vmem:[%s5 + $0x60] sm:$0xff]
      %v396 = vld [vmem:[%s5 + $0x68] sm:$0xff]
      %v397 = vld [vmem:[%s5 + $0x70] sm:$0xff]
      %v398 = vld [vmem:[%s5 + $0x78] sm:$0xff]
      %v399 = vld [vmem:[%s6] sm:$0xff]
      %400 = vmatpush.msra.mxu0 %v398
      %401 = vmatpush.msra.mxu0 %v397
      %402 = vmatpush.msra.mxu0 %v396
      %403 = vmatpush.msra.mxu0 %v395
      %404 = vmatpush.msra.mxu0 %v394
      %405 = vmatpush.msra.mxu0 %v393
      %406 = vmatpush.msra.mxu0 %v392
      %407 = vmatpush.msra.mxu0 %v391
      %408 = vmatpush.msra.mxu0 %v390
      %409 = vmatpush.msra.mxu0 %v389
      %410 = vmatpush.msra.mxu0 %v388
      %411 = vmatpush.msra.mxu0 %v387
      %412 = vmatpush.msra.mxu0 %v386
      %413 = vmatpush.msra.mxu0 %v385
      %414 = vmatpush.msra.mxu0 %v384
      %415 = vmatpush.msra.mxu0 %v383
      %416 = vmatmul.f32.gmra.mxu0 %v381
      %v417 = vpop.f32.mrf.mxu0
      %v418 = vadd.f32 %v399, %v417
      %419 = vdwg.mxu0
      %420 = vst [vmem:[%s298] sm:$0xff] %v418
      %p421 = scmp.lt.s32.totalorder %s20, 7
      %s422 = scalar_select %p421, %s20, 7
      %s423 = smul.addr %s422, 8
      %s424 = scalar_lea.vmem %s7, %s423
      // Predicated region
      $region53: #{_simple_rnn_sequence_impl.1} parent=47 // pred_check
        %p425 = pneg %p190
      $region54: #{_simple_rnn_sequence_impl.1} parent=47 // pred_check_branch
        %427 = sbr.rel (%p425) target = $region56
      $region55: #{_simple_rnn_sequence_impl.1} parent=47 // pred_region
        _
      $region56: #{_simple_rnn_sequence_impl.1} parent=47 // pred_fallthru
        _
      // Predicated region
      $region57: #{_simple_rnn_sequence_impl.1} parent=47 // pred_check
        %p428 = pneg %p211
      $region58: #{_simple_rnn_sequence_impl.1} parent=47 // pred_check_branch
        %430 = sbr.rel (%p428) target = $region60
      $region59: #{_simple_rnn_sequence_impl.1} parent=47 // pred_region
        _
      $region60: #{_simple_rnn_sequence_impl.1} parent=47 // pred_fallthru
        _
      // Predicated region
      $region61: #{_simple_rnn_sequence_impl.1} parent=47 // pred_check
        %p431 = pneg %p211
      $region62: #{_simple_rnn_sequence_impl.1} parent=47 // pred_check_branch
        %433 = sbr.rel (%p431) target = $region64
      $region63: #{_simple_rnn_sequence_impl.1} parent=47 // pred_region
        _
      $region64: #{_simple_rnn_sequence_impl.1} parent=47 // pred_fallthru
        _
    $region48: #{_simple_rnn_sequence_impl.1} parent=5 // pred_fallthru
      _
    %p434 = scmp.le.s32.totalorder 2, %s15
    // Predicated region
    $region65: #{_simple_rnn_sequence_impl.1} parent=5 // pred_check
      %p435 = pneg %p434
    $region66: #{_simple_rnn_sequence_impl.1} parent=5 // pred_check_branch
      %437 = sbr.rel (%p435) target = $region68
    $region67: #{_simple_rnn_sequence_impl.1} parent=5 // pred_region
      %s438 = ssub.s32 %s15, 2
      // Predicated region
      $region69: #{_simple_rnn_sequence_impl.1} parent=67 // pred_check
        %p439 = pneg %p196
      $region70: #{_simple_rnn_sequence_impl.1} parent=67 // pred_check_branch
        %441 = sbr.rel (%p439) target = $region72
      $region71: #{_simple_rnn_sequence_impl.1} parent=67 // pred_region
        %p442 = scmp.lt.s32.totalorder %s21, 7
        %s443 = scalar_select %p442, %s21, 7
        %s444 = smul.addr %s443, 8
        %s445 = scalar_lea.vmem %s7, %s444
      $region72: #{_simple_rnn_sequence_impl.1} parent=67 // pred_fallthru
        _
    $region68: #{_simple_rnn_sequence_impl.1} parent=5 // pred_fallthru
      _
  $region6: #{_simple_rnn_sequence_impl.1} parent=0 // loop_footer
    %s19 = sadd.s32 1, %s15
  $region7: #{_simple_rnn_sequence_impl.1} parent=0 // loop_footer_branch
    %14 = sbr.rel target = $region3
  $region8: #{_simple_rnn_sequence_impl.1} parent=0 // loop_exit
    _

</llo_original>
